<compile_context>
chip_gen: v7x
topology: tpu7x:2x2x1
jax: 0.10.0
libtpu: 0.0.40
codegen_flags: <defaults>
</compile_context>

<pallas_src>
import jax
import jax.numpy as jnp
from jax.experimental import pallas as pl
from jax.experimental.pallas import tpu as pltpu


def _round_up(x, k):
    return ((x + k - 1) // k) * k


def _nw_kernel(w_ref, q_ref, k_ref, v_ref, o_ref):
    # w_ref: SMEM (1,) f32
    # q_ref: (1, TILE_N) f32   (queries row, broadcast over the M sublane axis)
    # k_ref, v_ref: (M, TILE_N) f32/bf16
    # o_ref: (1, TILE_N) f32   (lane-dense output row)
    w = w_ref[0]
    c = -0.5 * w * w                              # hoisted scalar: logits = c*(q-k)^2

    k = k_ref[...].astype(jnp.float32)            # no-op for f32; upcast for bf16
    v = v_ref[...].astype(jnp.float32)

    d = q_ref[...] - k                            # (M, TN)
    # logits <= 0 always (c <= 0), so exp never overflows -> no max-subtraction.
    e = jnp.exp(c * (d * d))                      # (M, TN), EUP

    denom = jnp.sum(e, axis=0, keepdims=True)     # (1, TN), sublane reduce (XLU)
    num = jnp.sum(e * v, axis=0, keepdims=True)   # (1, TN)

    # Exact reciprocal (approx=True would fail the 1e-5 self-check).
    o_ref[...] = num * pl.reciprocal(denom, approx=False)


def _pick_tile_n(n, m, kv_itemsize):
    """Pick a lane-aligned tile along N from the device VMEM budget."""
    try:
        vmem_cap = int(pltpu.get_tpu_info().vmem_capacity_bytes)
    except Exception:
        vmem_cap = 64 << 20                       # conservative: v7x per-TC VMEM
    budget = int(vmem_cap * 0.40)                 # double-buffered k/v/q/out set
    per_col = 2 * m * kv_itemsize + 2 * 4         # k + v columns + q + out (f32)
    tile_n = (budget // 2) // per_col             # /2: double buffering
    tile_n = max(128, (tile_n // 128) * 128)
    tile_n = min(tile_n, 128 * 1024)              # diminishing returns past 128K
    n_up = _round_up(n, 128)
    tile_n = min(tile_n, n_up)                    # small-N fast path: one block
    return tile_n, vmem_cap


def nw_kernel_regression_prepped(w, q_row, keys_t, values_t):
    """Forward pass on pre-transposed, lane-dense data.

    w: (1,) f32; q_row: (1, N) f32; keys_t/values_t: (M, N) f32 or bf16.
    Callers that reuse keys/values across many forward passes should transpose
    once, cache this layout, and call this entry point (saves one HBM pass).
    Returns (N,) f32.
    """
    m, n = keys_t.shape
    w = w.astype(jnp.float32).reshape(1)
    q_row = q_row.astype(jnp.float32)

    kv_itemsize = keys_t.dtype.itemsize
    tile_n, vmem_cap = _pick_tile_n(n, m, kv_itemsize)
    grid_n = pl.cdiv(n, tile_n)

    # Scoped VMEM: double-buffered tiles + headroom, clamped to the device cap.
    per_step = tile_n * (2 * m * kv_itemsize + 2 * 4)
    vmem_bytes = 2 * per_step + (8 << 20)
    vmem_bytes = int(min(max(vmem_bytes, 16 << 20), int(vmem_cap * 0.75)))

    out = pl.pallas_call(
        _nw_kernel,
        out_shape=jax.ShapeDtypeStruct((1, n), jnp.float32),
        grid=(grid_n,),
        in_specs=[
            pl.BlockSpec(memory_space=pltpu.SMEM),          # w scalar
            pl.BlockSpec((1, tile_n), lambda i: (0, i)),    # queries row
            pl.BlockSpec((m, tile_n), lambda i: (0, i)),    # keys^T
            pl.BlockSpec((m, tile_n), lambda i: (0, i)),    # values^T
        ],
        out_specs=pl.BlockSpec((1, tile_n), lambda i: (0, i)),
        compiler_params=pltpu.CompilerParams(
            dimension_semantics=("parallel",),
            vmem_limit_bytes=vmem_bytes,
        ),
    )(w, q_row, keys_t, values_t)

    return out.reshape(-1)


def nw_kernel_regression(w, queries, keys, values):
    """w: (1,) f32; queries: (N,); keys, values: (N, M) -> (N,) f32.

    Transposes keys/values to the lane-dense (M, N) layout (one extra HBM pass);
    hoist this outside the call via nw_kernel_regression_prepped if keys/values
    are reused across calls.
    """
    n, m = keys.shape
    q_row = queries.astype(jnp.float32).reshape(1, n)
    k_t = keys.T            # keep caller dtype (f32 or bf16)
    v_t = values.T
    return nw_kernel_regression_prepped(w, q_row, k_t, v_t)


if __name__ == "__main__":
    key = jax.random.PRNGKey(0)
    k_w, k_q, k_k = jax.random.split(key, 3)

    # Shapes consistent with the original script: n_test = len(arange(0,5,0.1)) = 50,
    # 10 key/value pairs per query.
    N, M = 50, 10

    # Deterministic parameter init (torch.rand((1,)) -> uniform [0,1)).
    w = jax.random.uniform(k_w, (1,), dtype=jnp.float32)

    queries = jax.random.normal(k_q, (N,), dtype=jnp.float32)
    keys = jax.random.normal(k_k, (N, M), dtype=jnp.float32)
    values = jnp.arange(N * M, dtype=jnp.float32).reshape(N, M)

    out = nw_kernel_regression(w, queries, keys, values)
    out = jax.block_until_ready(out)

    # Pure-JAX reference check of the forward pass.
    q_rep = jnp.repeat(queries, M).reshape(N, M)
    logits = -((q_rep - keys) * w[0]) ** 2 / 2
    attn = jax.nn.softmax(logits, axis=1)
    ref = jnp.sum(attn * values, axis=1)
    assert out.shape == (N,)
    assert jnp.allclose(out, ref, rtol=1e-5, atol=1e-4)

    print("KERNEL_OK")
</pallas_src>

<mosaic_0001>
module attributes {stable_mosaic.version = 11 : i64} {
  func.func @_nw_kernel(%arg0: i32, %arg1: memref<1xf32, #tpu.memory_space<smem>>, %arg2: memref<1x128xf32, #tpu.memory_space<vmem>>, %arg3: memref<10x128xf32, #tpu.memory_space<vmem>>, %arg4: memref<10x128xf32, #tpu.memory_space<vmem>>, %arg5: memref<1x128xf32, #tpu.memory_space<vmem>>) attributes {dimension_semantics = [#tpu.dimension_semantics<parallel>], iteration_bounds = array<i64: 1>, scalar_prefetch = 0 : i64, scratch_operands = 0 : i64, tpu.core_type = #tpu.core_type<tc>, window_params = [{transform_indices = @transform_0, window_bounds = array<i64: 1>}, {transform_indices = @transform_1, window_bounds = array<i64: 1, 128>}, {transform_indices = @transform_2, window_bounds = array<i64: 10, 128>}, {transform_indices = @transform_3, window_bounds = array<i64: 10, 128>}, {transform_indices = @transform_4, window_bounds = array<i64: 1, 128>}]} {
    %c0 = arith.constant 0 : index
    %0 = memref.load %arg1[%c0] : memref<1xf32, #tpu.memory_space<smem>>
    %cst = arith.constant -5.000000e-01 : f32
    %1 = arith.mulf %cst, %0 : f32
    %2 = arith.mulf %1, %0 : f32
    %c0_0 = arith.constant 0 : index
    %c0_1 = arith.constant 0 : index
    %3 = vector.load %arg3[%c0_0, %c0_1] : memref<10x128xf32, #tpu.memory_space<vmem>>, vector<10x128xf32>
    %c0_2 = arith.constant 0 : index
    %c0_3 = arith.constant 0 : index
    %4 = vector.load %arg4[%c0_2, %c0_3] : memref<10x128xf32, #tpu.memory_space<vmem>>, vector<10x128xf32>
    %c0_4 = arith.constant 0 : index
    %c0_5 = arith.constant 0 : index
    %5 = vector.load %arg2[%c0_4, %c0_5] : memref<1x128xf32, #tpu.memory_space<vmem>>, vector<1x128xf32>
    %6 = vector.broadcast %5 : vector<1x128xf32> to vector<10x128xf32>
    %7 = arith.subf %6, %3 : vector<10x128xf32>
    %8 = arith.mulf %7, %7 : vector<10x128xf32>
    %9 = vector.broadcast %2 : f32 to vector<10x128xf32>
    %10 = arith.mulf %9, %8 : vector<10x128xf32>
    %11 = math.exp %10 : vector<10x128xf32>
    %cst_6 = arith.constant dense<0.000000e+00> : vector<128xf32>
    %12 = vector.multi_reduction <add>, %11, %cst_6 [0] : vector<10x128xf32> to vector<128xf32>
    %13 = vector.shape_cast %12 : vector<128xf32> to vector<1x128xf32>
    %14 = arith.mulf %11, %4 : vector<10x128xf32>
    %cst_7 = arith.constant dense<0.000000e+00> : vector<128xf32>
    %15 = vector.multi_reduction <add>, %14, %cst_7 [0] : vector<10x128xf32> to vector<128xf32>
    %16 = vector.shape_cast %15 : vector<128xf32> to vector<1x128xf32>
    %17 = tpu.reciprocal %13 : vector<1x128xf32> -> vector<1x128xf32>
    %18 = arith.mulf %16, %17 : vector<1x128xf32>
    %c0_8 = arith.constant 0 : index
    %c0_9 = arith.constant 0 : index
    %19 = vector.load %arg5[%c0_8, %c0_9] : memref<1x128xf32, #tpu.memory_space<vmem>>, vector<1x128xf32>
    tpu.vector_store %arg5[%c0_8, %c0_9], %18 {strides = array<i32>} : memref<1x128xf32, #tpu.memory_space<vmem>>, vector<1x128xf32>,
    return
  }
  func.func @transform_0(%arg0: i32) -> i32 {
    %c0_i32 = arith.constant 0 : i32
    %c0_i32_0 = arith.constant 0 : i32
    return %c0_i32 : i32
  }
  func.func @transform_1(%arg0: i32) -> (i32, i32) {
    %c0_i32 = arith.constant 0 : i32
    %c0_i32_0 = arith.constant 0 : i32
    return %c0_i32, %arg0 : i32, i32
  }
  func.func @transform_2(%arg0: i32) -> (i32, i32) {
    %c0_i32 = arith.constant 0 : i32
    %c0_i32_0 = arith.constant 0 : i32
    return %c0_i32, %arg0 : i32, i32
  }
  func.func @transform_3(%arg0: i32) -> (i32, i32) {
    %c0_i32 = arith.constant 0 : i32
    %c0_i32_0 = arith.constant 0 : i32
    return %c0_i32, %arg0 : i32, i32
  }
  func.func @transform_4(%arg0: i32) -> (i32, i32) {
    %c0_i32 = arith.constant 0 : i32
    %c0_i32_0 = arith.constant 0 : i32
    return %c0_i32, %arg0 : i32, i32
  }
}

</mosaic_0001>

<llo_original>
// kernel: tpu_custom_call.1
$region0: #{tpu_custom_call.1}
  #allocation0 [shape = 'u32[]', space=smem, size = 0x4, offset = 0x4, fixed_abs, tag = 'smem constant byte address 0x4 - core index']
  #allocation1 [shape = 'u32[144,128]{1,0:T(1,128)}', space=vmem, size = 0x12000, scoped, tag = 'internal scratch']
  #allocation2 [shape = 'f32[1]{0:T(128)S(6)}', space=smem, size = 0x200, scoped, tag = 'scoped memory for tpu_custom_call.1']
  %s0 = inlined_call_operand.<no memory space> [shape: f32[1], index: 0, kind: input, shape index: {}]
  %s1 = inlined_call_operand.vmem [shape: f32[1,50], index: 1, kind: input, shape index: {}]
  %s2 = inlined_call_operand.hbm [shape: f32[10,50], index: 2, kind: input, shape index: {}]
  %s3 = inlined_call_operand.hbm [shape: f32[10,50], index: 3, kind: input, shape index: {}]
  %s4 = inlined_call_operand.hbm [shape: f32[1,50], index: 4, kind: output, shape index: {}]
  %s5 = sld [smem:[#allocation0]]
  $region34: #{tpu_custom_call.1} parent=0
    _
  %s7 = ssub.s32 1, %s5
  %s8 = scalar_select 0, %s7, %s5
  %9 = sst [smem:[#allocation2]] %s0
  $region1: #{tpu_custom_call.1} parent=0
    #allocation3 [shape = 'u8[8192]{0}', space=vmem, size = 0x2000, scoped, tag = 'input window, operand 2, single buffered']
    #allocation4 [shape = 's32[1]{0}', space=sflag, size = 0x4, scoped, tag = 'scoped memory for tpu_custom_call.1']
    #allocation5 [shape = 's32[1]{0}', space=sflag, size = 0x4, scoped, tag = 'scoped memory for tpu_custom_call.1']
    #allocation6 [shape = 'u8[8192]{0}', space=vmem, size = 0x2000, scoped, tag = 'input window, operand 3, single buffered']
    #allocation7 [shape = 's32[1]{0}', space=sflag, size = 0x4, scoped, tag = 'scoped memory for tpu_custom_call.1']
    #allocation8 [shape = 'u8[512]{0}', space=vmem, size = 0x400, scoped, tag = 'output window, operand 0, single buffered']
    %10 = vsyncpa [#allocation4], 0
    %11 = vsyncpa [#allocation7], 0
    %12 = vsyncpa [#allocation5], 0
    // Predicated region
    $region2: #{tpu_custom_call.1} parent=1 // pred_check
      _
    $region3: #{tpu_custom_call.1} parent=1 // pred_check_branch
      %14 = sbr.rel (0) target = $region5
    $region4: #{tpu_custom_call.1} parent=1 // pred_region
      _
    $region5: #{tpu_custom_call.1} parent=1 // pred_fallthru
      _
    // Predicated region
    $region6: #{tpu_custom_call.1} parent=1 // pred_check
      _
    $region7: #{tpu_custom_call.1} parent=1 // pred_check_branch
      %16 = sbr.rel (0) target = $region9
    $region8: #{tpu_custom_call.1} parent=1 // pred_region
      _
    $region9: #{tpu_custom_call.1} parent=1 // pred_fallthru
      _
    // Predicated region
    $region10: #{tpu_custom_call.1} parent=1 // pred_check
      _
    $region11: #{tpu_custom_call.1} parent=1 // pred_check_branch
      %18 = sbr.rel (0) target = $region13
    $region12: #{tpu_custom_call.1} parent=1 // pred_region
      %s20 = ssub.s32 256, 256
      %21 = vsyncadd [#allocation4], %s20
      %s22 = sshll.u32 [#allocation3], 4
      %s23 = int_to_ptr.vmem [resolvable:$true] %s22
      %28 = dma.hbm_to_vmem [thread:$0]  %s2, 256, %s23, [#allocation4], 128, 128, 8
    $region13: #{tpu_custom_call.1} parent=1 // pred_fallthru
      _
    // Predicated region
    $region14: #{tpu_custom_call.1} parent=1 // pred_check
      _
    $region15: #{tpu_custom_call.1} parent=1 // pred_check_branch
      %30 = sbr.rel (0) target = $region17
    $region16: #{tpu_custom_call.1} parent=1 // pred_region
      %s32 = ssub.s32 256, 256
      %33 = vsyncadd [#allocation7], %s32
      %s34 = sshll.u32 [#allocation6], 4
      %s35 = int_to_ptr.vmem [resolvable:$true] %s34
      %40 = dma.hbm_to_vmem [thread:$0]  %s3, 256, %s35, [#allocation7], 128, 128, 8
    $region17: #{tpu_custom_call.1} parent=1 // pred_fallthru
      _
    // Predicated region
    $region18: #{tpu_custom_call.1} parent=1 // pred_check
      _
    $region19: #{tpu_custom_call.1} parent=1 // pred_check_branch
      %42 = sbr.rel (0) target = $region21
    $region20: #{tpu_custom_call.1} parent=1 // pred_region
      %43 = dma.done [#allocation4], 256
    $region21: #{tpu_custom_call.1} parent=1 // pred_fallthru
      _
    // Predicated region
    $region22: #{tpu_custom_call.1} parent=1 // pred_check
      _
    $region23: #{tpu_custom_call.1} parent=1 // pred_check_branch
      %45 = sbr.rel (0) target = $region25
    $region24: #{tpu_custom_call.1} parent=1 // pred_region
      %46 = dma.done [#allocation7], 256
    $region25: #{tpu_custom_call.1} parent=1 // pred_fallthru
      _
    %s47 = sld [smem:[#allocation2]]
    %s48 = smul.f32 %s47, -0.5
    %s49 = smul.f32 %s48, %s47
    %v50 = vld [vmem:[#allocation3] sm:$0xff]
    %v51 = vld [vmem:[#allocation3 + $0x8] sm:$0x3]
    %v52 = vld [vmem:[#allocation6] sm:$0xff]
    %v53 = vld [vmem:[#allocation6 + $0x8] sm:$0x3]
    %v54 = vld [vmem:[%s1] sm:$0x1]
    %v56 = vlaneseq
    %v57 = vshrl.u32 %v56, 7
    %v58 = vsub.s32 0, %v57
    %v59 = vrot.slane %v54, %v58
    %v61 = vsub.f32 %v59, %v50
    %v62 = vsub.f32 %v59, %v51
    %v63 = vmul.f32 %v61, %v61
    %v64 = vmul.f32 %v62, %v62
    %v65 = vstv %s49
    %v66 = vmul.f32 %v65, %v63
    %v67 = vmul.f32 %v65, %v64
    %v68 = vmul.f32 %v66, 1.442695
    %v69 = vpow.pop %v68
    %v70 = vmul.f32 %v67, 1.442695
    %v71 = vpow.pop %v70
    %vm72 = vcmask 1041408
    %v73 = vsel %vm72, %v71, 0.0
    %v74 = vadd.f32 %v69, %v73
    %v75 = vrot.slane %v74, 4
    %v76 = vadd.f32 %v74, %v75
    %v77 = vrot.slane %v76, 2
    %v78 = vadd.f32 %v76, %v77
    %v79 = vrot.slane %v78, 1
    %v80 = vadd.f32 %v78, %v79
    %v81 = vmul.f32 %v69, %v52
    %v82 = vmul.f32 %v71, %v53
    %v83 = vsel %vm72, %v82, 0.0
    %v84 = vadd.f32 %v81, %v83
    %v85 = vrot.slane %v84, 4
    %v86 = vadd.f32 %v84, %v85
    %v87 = vrot.slane %v86, 2
    %v88 = vadd.f32 %v86, %v87
    %v89 = vrot.slane %v88, 1
    %v90 = vadd.f32 %v88, %v89
    %v91 = vrcp.pop %v80
    %v92 = vmul.f32 %v90, %v91
    %93 = vst [vmem:[#allocation8] sm:$0x1] %v92
    // Predicated region
    $region26: #{tpu_custom_call.1} parent=1 // pred_check
      _
    $region27: #{tpu_custom_call.1} parent=1 // pred_check_branch
      %95 = sbr.rel (0) target = $region29
    $region28: #{tpu_custom_call.1} parent=1 // pred_region
      %s97 = ssub.s32 16, 16
      %98 = vsyncadd [#allocation5], %s97
      %s100 = sshll.u32 [#allocation8], 4
      %s101 = int_to_ptr.vmem [resolvable:$true] %s100
      %103 = dma.vmem_to_hbm [thread:$0]  %s101, 16, %s4, [#allocation5]
    $region29: #{tpu_custom_call.1} parent=1 // pred_fallthru
      _
    // Predicated region
    $region30: #{tpu_custom_call.1} parent=1 // pred_check
      _
    $region31: #{tpu_custom_call.1} parent=1 // pred_check_branch
      %105 = sbr.rel (0) target = $region33
    $region32: #{tpu_custom_call.1} parent=1 // pred_region
      %106 = dma.done [#allocation5], 16
    $region33: #{tpu_custom_call.1} parent=1 // pred_fallthru
      _
    %107 = vsyncpa [#allocation4], 1
    %108 = vsyncpa [#allocation7], 1
    %109 = vsyncpa [#allocation5], 1

</llo_original>
